<compile_context>
chip_gen: v7x
topology: tpu7x:2x2x1
jax: 0.10.0
libtpu: 0.0.40
codegen_flags: <defaults>
</compile_context>

<pallas_src>
import jax
import jax.numpy as jnp
from jax.experimental import pallas as pl
from jax.experimental.pallas import tpu as pltpu

N_IN = 64
H = 128
N_OUT = 10
N_OUT_PAD = 128          # lane-dense classifier width
NEG_PAD = -1e30          # pad-logit bias -> exp underflows to exactly 0
MAX_TB = 2048            # batch tile cap (VMEM-safe on v5e/v6e/v7x with the limit below)
VMEM_LIMIT = 48 * 1024 * 1024   # explicit scoped-VMEM budget (<= v7x 64 MiB physical)


def feedforward_kernel(x_ref, w1_ref, b1_ref, w2_ref, b2_ref, w3_ref, b3_ref, o_ref):
    # x tile: [TB, 64] f32 -> bf16 for the MXU (f32 accumulation everywhere).
    x = x_ref[...].astype(jnp.bfloat16)

    # l1 + ReLU (f32 math, then bf16 staging for the next MXU op -> halves VMEM spill).
    h1 = jnp.dot(x, w1_ref[...], preferred_element_type=jnp.float32) + b1_ref[...]
    h1 = jnp.maximum(h1, 0.0).astype(jnp.bfloat16)                   # [TB, 128] bf16

    # l2 + Sigmoid (EUP exp + approx reciprocal over the full tile), bf16 staging after.
    h2 = jnp.dot(h1, w2_ref[...], preferred_element_type=jnp.float32) + b2_ref[...]
    features = pl.reciprocal(1.0 + jnp.exp(-h2), approx=True)        # [TB, 128] f32
    features = features.astype(jnp.bfloat16)                         # [TB, 128] bf16

    # classifier (padded to 128 lanes) + Softmax(dim=1); exact normalization.
    logits = jnp.dot(features, w3_ref[...],
                     preferred_element_type=jnp.float32) + b3_ref[...]
    m = jnp.max(logits, axis=-1, keepdims=True)                      # max from real cols only
    e = jnp.exp(logits - m)                                          # padded cols -> exactly 0
    probs = e / jnp.sum(e, axis=-1, keepdims=True)                   # exact [TB,1] divide
    o_ref[...] = probs.astype(o_ref.dtype)                           # bf16, lane-dense store


def prepare_params(params):
    """One-time prep (hoisted out of the hot path):
    PyTorch [out, in] -> [in, out], bf16 weights, classifier padded to 128 lanes."""
    w1 = params["w1"].T.astype(jnp.bfloat16)                         # [64, 128]
    w2 = params["w2"].T.astype(jnp.bfloat16)                         # [128, 128]
    w3 = jnp.zeros((H, N_OUT_PAD), jnp.bfloat16)
    w3 = w3.at[:, :N_OUT].set(params["w3"].T.astype(jnp.bfloat16))   # [128, 128]
    b1 = params["b1"][None, :].astype(jnp.float32)                   # [1, 128]
    b2 = params["b2"][None, :].astype(jnp.float32)                   # [1, 128]
    b3 = jnp.full((1, N_OUT_PAD), NEG_PAD, jnp.float32)
    b3 = b3.at[0, :N_OUT].set(params["b3"].astype(jnp.float32))      # [1, 128]
    return {"w1": w1, "b1": b1, "w2": w2, "b2": b2, "w3": w3, "b3": b3}


def feedforward(x, p):
    """x: [B, 64] float32. p: output of prepare_params(). Returns [B, 10] float32."""
    B = x.shape[0]
    # Batch tile: multiple of 8 sublanes, capped at MAX_TB, and sized so that whenever
    # B is large enough the grid has >= 2 steps (both v7x TensorCores get fed).
    half = -(-B // 2)                                # cdiv(B, 2)
    TB = min(MAX_TB, max(8, ((half + 7) // 8) * 8))

    out = pl.pallas_call(
        feedforward_kernel,
        out_shape=jax.ShapeDtypeStruct((B, N_OUT_PAD), jnp.bfloat16),
        grid=(pl.cdiv(B, TB),),                      # ragged last block handled by Pallas
        in_specs=[
            pl.BlockSpec((TB, N_IN), lambda i: (i, 0)),          # x tile, pipelined
            pl.BlockSpec((N_IN, H), lambda i: (0, 0)),           # w1 (VMEM-resident)
            pl.BlockSpec((1, H), lambda i: (0, 0)),              # b1
            pl.BlockSpec((H, H), lambda i: (0, 0)),              # w2
            pl.BlockSpec((1, H), lambda i: (0, 0)),              # b2
            pl.BlockSpec((H, N_OUT_PAD), lambda i: (0, 0)),      # w3 (padded)
            pl.BlockSpec((1, N_OUT_PAD), lambda i: (0, 0)),      # b3 (padded)
        ],
        out_specs=pl.BlockSpec((TB, N_OUT_PAD), lambda i: (i, 0)),
        compiler_params=pltpu.CompilerParams(
            dimension_semantics=("parallel",),
            vmem_limit_bytes=VMEM_LIMIT,
        ),
    )(x, p["w1"], p["b1"], p["w2"], p["b2"], p["w3"], p["b3"])

    # Tiny slice + upcast (B x 10); heavy HBM writeback already happened in bf16.
    return out[:, :N_OUT].astype(jnp.float32)


def feedforward_ref(x, params):
    """Pure-JAX f32 reference matching the PyTorch module."""
    h1 = jnp.maximum(x @ params["w1"].T + params["b1"], 0.0)
    feats = jax.nn.sigmoid(h1 @ params["w2"].T + params["b2"])
    logits = feats @ params["w3"].T + params["b3"]
    return jax.nn.softmax(logits, axis=1)


def init_params(key):
    """Deterministic init matching nn.Linear shapes (PyTorch convention: W is [out, in])."""
    ks = jax.random.split(key, 6)

    def unif(k, shape, fan_in):
        bound = 1.0 / jnp.sqrt(fan_in)
        return jax.random.uniform(k, shape, jnp.float32, -bound, bound)

    return {
        "w1": unif(ks[0], (128, 64), 64),   "b1": unif(ks[1], (128,), 64),
        "w2": unif(ks[2], (128, 128), 128), "b2": unif(ks[3], (128,), 128),
        "w3": unif(ks[4], (10, 128), 128),  "b3": unif(ks[5], (10,), 128),
    }


if __name__ == "__main__":
    key = jax.random.PRNGKey(0)
    k_x, k_p = jax.random.split(key)

    B = 2
    x = jax.random.uniform(k_x, (B, 64), jnp.float32)   # torch.rand analogue
    params = init_params(k_p)
    prepped = prepare_params(params)                    # one-time weight prep

    y = feedforward(x, prepped)
    y = jax.block_until_ready(y)

    # Sanity: shape, softmax rows sum to ~1 (bf16 output quantization), matches f32 reference.
    assert y.shape == (B, 10)
    row_sums = jnp.sum(y, axis=1)
    assert jnp.allclose(row_sums, jnp.ones((B,)), atol=1e-2)

    y_ref = feedforward_ref(x, params)
    assert jnp.max(jnp.abs(y - y_ref)) < 3e-2            # bf16 matmuls + bf16 output

    print("KERNEL_OK")
</pallas_src>

<mosaic_0001>
module attributes {stable_mosaic.version = 11 : i64} {
  func.func @feedforward_kernel(%arg0: i32, %arg1: memref<8x64xf32, #tpu.memory_space<vmem>>, %arg2: memref<64x128xbf16, #tpu.memory_space<vmem>>, %arg3: memref<1x128xf32, #tpu.memory_space<vmem>>, %arg4: memref<128x128xbf16, #tpu.memory_space<vmem>>, %arg5: memref<1x128xf32, #tpu.memory_space<vmem>>, %arg6: memref<128x128xbf16, #tpu.memory_space<vmem>>, %arg7: memref<1x128xf32, #tpu.memory_space<vmem>>, %arg8: memref<8x128xbf16, #tpu.memory_space<vmem>>) attributes {dimension_semantics = [#tpu.dimension_semantics<parallel>], iteration_bounds = array<i64: 1>, scalar_prefetch = 0 : i64, scratch_operands = 0 : i64, tpu.core_type = #tpu.core_type<tc>, window_params = [{transform_indices = @transform_0, window_bounds = array<i64: 8, 64>}, {pipeline_mode = #tpu.pipeline_mode<synchronous>, transform_indices = @transform_1, window_bounds = array<i64: 64, 128>}, {pipeline_mode = #tpu.pipeline_mode<synchronous>, transform_indices = @transform_2, window_bounds = array<i64: 1, 128>}, {pipeline_mode = #tpu.pipeline_mode<synchronous>, transform_indices = @transform_3, window_bounds = array<i64: 128, 128>}, {pipeline_mode = #tpu.pipeline_mode<synchronous>, transform_indices = @transform_4, window_bounds = array<i64: 1, 128>}, {pipeline_mode = #tpu.pipeline_mode<synchronous>, transform_indices = @transform_5, window_bounds = array<i64: 128, 128>}, {pipeline_mode = #tpu.pipeline_mode<synchronous>, transform_indices = @transform_6, window_bounds = array<i64: 1, 128>}, {transform_indices = @transform_7, window_bounds = array<i64: 8, 128>}]} {
    %c0 = arith.constant 0 : index
    %c0_0 = arith.constant 0 : index
    %0 = vector.load %arg1[%c0, %c0_0] : memref<8x64xf32, #tpu.memory_space<vmem>>, vector<8x64xf32>
    %1 = arith.truncf %0 : vector<8x64xf32> to vector<8x64xbf16>
    %c0_1 = arith.constant 0 : index
    %c0_2 = arith.constant 0 : index
    %2 = vector.load %arg2[%c0_1, %c0_2] : memref<64x128xbf16, #tpu.memory_space<vmem>>, vector<64x128xbf16>
    %cst = arith.constant dense<0.000000e+00> : vector<8x128xf32>
    %3 = tpu.matmul %1, %2, %cst {dimension_numbers = #tpu.dot_dimension_numbers<[1], [0], [0], [1], [0, 0, 1, 1], [], []>} : vector<8x64xbf16>, vector<64x128xbf16>, vector<8x128xf32> -> vector<8x128xf32>
    %c0_3 = arith.constant 0 : index
    %c0_4 = arith.constant 0 : index
    %4 = vector.load %arg3[%c0_3, %c0_4] : memref<1x128xf32, #tpu.memory_space<vmem>>, vector<1x128xf32>
    %5 = vector.broadcast %4 : vector<1x128xf32> to vector<8x128xf32>
    %6 = arith.addf %3, %5 : vector<8x128xf32>
    %cst_5 = arith.constant 0.000000e+00 : f32
    %7 = vector.broadcast %cst_5 : f32 to vector<8x128xf32>
    %8 = arith.maximumf %6, %7 : vector<8x128xf32>
    %9 = arith.truncf %8 : vector<8x128xf32> to vector<8x128xbf16>
    %c0_6 = arith.constant 0 : index
    %c0_7 = arith.constant 0 : index
    %10 = vector.load %arg4[%c0_6, %c0_7] : memref<128x128xbf16, #tpu.memory_space<vmem>>, vector<128x128xbf16>
    %cst_8 = arith.constant dense<0.000000e+00> : vector<8x128xf32>
    %11 = tpu.matmul %9, %10, %cst_8 {dimension_numbers = #tpu.dot_dimension_numbers<[1], [0], [0], [1], [0, 0, 1, 1], [], []>} : vector<8x128xbf16>, vector<128x128xbf16>, vector<8x128xf32> -> vector<8x128xf32>
    %c0_9 = arith.constant 0 : index
    %c0_10 = arith.constant 0 : index
    %12 = vector.load %arg5[%c0_9, %c0_10] : memref<1x128xf32, #tpu.memory_space<vmem>>, vector<1x128xf32>
    %13 = vector.broadcast %12 : vector<1x128xf32> to vector<8x128xf32>
    %14 = arith.addf %11, %13 : vector<8x128xf32>
    %cst_11 = arith.constant 0.000000e+00 : f32
    %15 = vector.broadcast %cst_11 : f32 to vector<8x128xf32>
    %16 = arith.subf %15, %14 : vector<8x128xf32>
    %17 = math.exp %16 : vector<8x128xf32>
    %cst_12 = arith.constant 1.000000e+00 : f32
    %18 = vector.broadcast %cst_12 : f32 to vector<8x128xf32>
    %19 = arith.addf %18, %17 : vector<8x128xf32>
    %20 = tpu.reciprocal %19 {approx = true} : vector<8x128xf32> -> vector<8x128xf32>
    %21 = arith.truncf %20 : vector<8x128xf32> to vector<8x128xbf16>
    %c0_13 = arith.constant 0 : index
    %c0_14 = arith.constant 0 : index
    %22 = vector.load %arg6[%c0_13, %c0_14] : memref<128x128xbf16, #tpu.memory_space<vmem>>, vector<128x128xbf16>
    %cst_15 = arith.constant dense<0.000000e+00> : vector<8x128xf32>
    %23 = tpu.matmul %21, %22, %cst_15 {dimension_numbers = #tpu.dot_dimension_numbers<[1], [0], [0], [1], [0, 0, 1, 1], [], []>} : vector<8x128xbf16>, vector<128x128xbf16>, vector<8x128xf32> -> vector<8x128xf32>
    %c0_16 = arith.constant 0 : index
    %c0_17 = arith.constant 0 : index
    %24 = vector.load %arg7[%c0_16, %c0_17] : memref<1x128xf32, #tpu.memory_space<vmem>>, vector<1x128xf32>
    %25 = vector.broadcast %24 : vector<1x128xf32> to vector<8x128xf32>
    %26 = arith.addf %23, %25 : vector<8x128xf32>
    %cst_18 = arith.constant dense<0xFF800000> : vector<8xf32>
    %27 = vector.multi_reduction <maximumf>, %26, %cst_18 [1] : vector<8x128xf32> to vector<8xf32>
    %28 = vector.shape_cast %27 : vector<8xf32> to vector<8x1xf32>
    %29 = vector.broadcast %28 : vector<8x1xf32> to vector<8x128xf32>
    %30 = arith.subf %26, %29 : vector<8x128xf32>
    %31 = math.exp %30 : vector<8x128xf32>
    %cst_19 = arith.constant dense<0.000000e+00> : vector<8xf32>
    %32 = vector.multi_reduction <add>, %31, %cst_19 [1] : vector<8x128xf32> to vector<8xf32>
    %33 = vector.shape_cast %32 : vector<8xf32> to vector<8x1xf32>
    %34 = vector.broadcast %33 : vector<8x1xf32> to vector<8x128xf32>
    %35 = arith.divf %31, %34 : vector<8x128xf32>
    %36 = arith.truncf %35 : vector<8x128xf32> to vector<8x128xbf16>
    %c0_20 = arith.constant 0 : index
    %c0_21 = arith.constant 0 : index
    %37 = vector.load %arg8[%c0_20, %c0_21] : memref<8x128xbf16, #tpu.memory_space<vmem>>, vector<8x128xbf16>
    tpu.vector_store %arg8[%c0_20, %c0_21], %36 {strides = array<i32>} : memref<8x128xbf16, #tpu.memory_space<vmem>>, vector<8x128xbf16>,
    return
  }
  func.func @transform_0(%arg0: i32) -> (i32, i32) {
    %c0_i32 = arith.constant 0 : i32
    %c0_i32_0 = arith.constant 0 : i32
    return %arg0, %c0_i32 : i32, i32
  }
  func.func @transform_1(%arg0: i32) -> (i32, i32) {
    %c0_i32 = arith.constant 0 : i32
    %c0_i32_0 = arith.constant 0 : i32
    %c0_i32_1 = arith.constant 0 : i32
    return %c0_i32, %c0_i32_0 : i32, i32
  }
  func.func @transform_2(%arg0: i32) -> (i32, i32) {
    %c0_i32 = arith.constant 0 : i32
    %c0_i32_0 = arith.constant 0 : i32
    %c0_i32_1 = arith.constant 0 : i32
    return %c0_i32, %c0_i32_0 : i32, i32
  }
  func.func @transform_3(%arg0: i32) -> (i32, i32) {
    %c0_i32 = arith.constant 0 : i32
    %c0_i32_0 = arith.constant 0 : i32
    %c0_i32_1 = arith.constant 0 : i32
    return %c0_i32, %c0_i32_0 : i32, i32
  }
  func.func @transform_4(%arg0: i32) -> (i32, i32) {
    %c0_i32 = arith.constant 0 : i32
    %c0_i32_0 = arith.constant 0 : i32
    %c0_i32_1 = arith.constant 0 : i32
    return %c0_i32, %c0_i32_0 : i32, i32
  }
  func.func @transform_5(%arg0: i32) -> (i32, i32) {
    %c0_i32 = arith.constant 0 : i32
    %c0_i32_0 = arith.constant 0 : i32
    %c0_i32_1 = arith.constant 0 : i32
    return %c0_i32, %c0_i32_0 : i32, i32
  }
  func.func @transform_6(%arg0: i32) -> (i32, i32) {
    %c0_i32 = arith.constant 0 : i32
    %c0_i32_0 = arith.constant 0 : i32
    %c0_i32_1 = arith.constant 0 : i32
    return %c0_i32, %c0_i32_0 : i32, i32
  }
  func.func @transform_7(%arg0: i32) -> (i32, i32) {
    %c0_i32 = arith.constant 0 : i32
    %c0_i32_0 = arith.constant 0 : i32
    return %arg0, %c0_i32 : i32, i32
  }
}

</mosaic_0001>

<llo_original>
// kernel: tpu_custom_call.1
$region0: #{tpu_custom_call.1}
  #allocation0 [shape = 'u32[]', space=smem, size = 0x4, offset = 0x4, fixed_abs, tag = 'smem constant byte address 0x4 - core index']
  #allocation1 [shape = 'u32[144,128]{1,0:T(1,128)}', space=vmem, size = 0x12000, scoped, tag = 'internal scratch']
  %s0 = inlined_call_operand.hbm [shape: f32[2,64], index: 0, kind: input, shape index: {}]
  %s1 = inlined_call_operand.hbm [shape: bf16[64,128], index: 1, kind: input, shape index: {}]
  %s2 = inlined_call_operand.vmem [shape: f32[1,128], index: 2, kind: input, shape index: {}]
  %s3 = inlined_call_operand.hbm [shape: bf16[128,128], index: 3, kind: input, shape index: {}]
  %s4 = inlined_call_operand.vmem [shape: f32[1,128], index: 4, kind: input, shape index: {}]
  %s5 = inlined_call_operand.hbm [shape: bf16[128,128], index: 5, kind: input, shape index: {}]
  %s6 = inlined_call_operand.vmem [shape: f32[1,128], index: 6, kind: input, shape index: {}]
  %s7 = inlined_call_operand.hbm [shape: bf16[2,128], index: 7, kind: output, shape index: {}]
  %s8 = sld [smem:[#allocation0]]
  $region54: #{tpu_custom_call.1} parent=0
    _
  %s10 = ssub.s32 1, %s8
  %s11 = scalar_select 0, %s10, %s8
  $region1: #{tpu_custom_call.1} parent=0
    #allocation2 [shape = 'u8[4096]{0}', space=vmem, size = 0x1000, scoped, tag = 'input window, operand 0, single buffered']
    #allocation3 [shape = 's32[1]{0}', space=sflag, size = 0x4, scoped, tag = 'scoped memory for tpu_custom_call.1']
    #allocation4 [shape = 's32[1]{0}', space=sflag, size = 0x4, scoped, tag = 'scoped memory for tpu_custom_call.1']
    #allocation5 [shape = 'u8[16384]{0}', space=vmem, size = 0x4000, scoped, tag = 'input window, operand 1, single buffered']
    #allocation6 [shape = 's32[1]{0}', space=sflag, size = 0x4, scoped, tag = 'scoped memory for tpu_custom_call.1']
    #allocation7 [shape = 'u8[32768]{0}', space=vmem, size = 0x8000, scoped, tag = 'input window, operand 3, single buffered']
    #allocation8 [shape = 'u8[32768]{0}', space=vmem, size = 0x8000, scoped, tag = 'input window, operand 5, single buffered']
    #allocation9 [shape = 's32[1]{0}', space=sflag, size = 0x4, scoped, tag = 'scoped memory for tpu_custom_call.1']
    #allocation10 [shape = 'u8[2048]{0}', space=vmem, size = 0x800, scoped, tag = 'output window, operand 0, single buffered']
    %12 = vsyncpa [#allocation3], 0
    %13 = vsyncpa [#allocation6], 0
    %14 = vsyncpa [#allocation9], 0
    %15 = vsyncpa [#allocation4], 0
    // Predicated region
    $region2: #{tpu_custom_call.1} parent=1 // pred_check
      _
    $region3: #{tpu_custom_call.1} parent=1 // pred_check_branch
      %17 = sbr.rel (0) target = $region5
    $region4: #{tpu_custom_call.1} parent=1 // pred_region
      %s19 = ssub.s32 128, 32
      %20 = vsyncadd [#allocation3], %s19
      %s21 = sshll.u32 [#allocation2], 4
      %s22 = int_to_ptr.vmem [resolvable:$true] %s21
      %27 = dma.hbm_to_vmem [thread:$0]  %s0, 32, %s22, [#allocation3], 32, 32, 2
    $region5: #{tpu_custom_call.1} parent=1 // pred_fallthru
      _
    // Predicated region
    $region6: #{tpu_custom_call.1} parent=1 // pred_check
      _
    $region7: #{tpu_custom_call.1} parent=1 // pred_check_branch
      %29 = sbr.rel (0) target = $region9
    $region8: #{tpu_custom_call.1} parent=1 // pred_region
      %s31 = ssub.s32 512, 512
      %32 = vsyncadd [#allocation6], %s31
      %s33 = sshll.u32 [#allocation5], 4
      %s34 = int_to_ptr.vmem [resolvable:$true] %s33
      %39 = dma.hbm_to_vmem [thread:$0]  %s1, 512, %s34, [#allocation6], 64, 64, 4
    $region9: #{tpu_custom_call.1} parent=1 // pred_fallthru
      _
    // Predicated region
    $region10: #{tpu_custom_call.1} parent=1 // pred_check
      _
    $region11: #{tpu_custom_call.1} parent=1 // pred_check_branch
      %41 = sbr.rel (0) target = $region13
    $region12: #{tpu_custom_call.1} parent=1 // pred_region
      _
    $region13: #{tpu_custom_call.1} parent=1 // pred_fallthru
      _
    // Predicated region
    $region14: #{tpu_custom_call.1} parent=1 // pred_check
      _
    $region15: #{tpu_custom_call.1} parent=1 // pred_check_branch
      %43 = sbr.rel (0) target = $region17
    $region16: #{tpu_custom_call.1} parent=1 // pred_region
      %s45 = ssub.s32 1024, 1024
      %46 = vsyncadd [#allocation6], %s45
      %s47 = sshll.u32 [#allocation7], 4
      %s48 = int_to_ptr.vmem [resolvable:$true] %s47
      %53 = dma.hbm_to_vmem [thread:$0]  %s3, 1024, %s48, [#allocation6], 64, 64, 4
    $region17: #{tpu_custom_call.1} parent=1 // pred_fallthru
      _
    // Predicated region
    $region18: #{tpu_custom_call.1} parent=1 // pred_check
      _
    $region19: #{tpu_custom_call.1} parent=1 // pred_check_branch
      %55 = sbr.rel (0) target = $region21
    $region20: #{tpu_custom_call.1} parent=1 // pred_region
      _
    $region21: #{tpu_custom_call.1} parent=1 // pred_fallthru
      _
    // Predicated region
    $region22: #{tpu_custom_call.1} parent=1 // pred_check
      _
    $region23: #{tpu_custom_call.1} parent=1 // pred_check_branch
      %57 = sbr.rel (0) target = $region25
    $region24: #{tpu_custom_call.1} parent=1 // pred_region
      %s59 = ssub.s32 1024, 1024
      %60 = vsyncadd [#allocation9], %s59
      %s61 = sshll.u32 [#allocation8], 4
      %s62 = int_to_ptr.vmem [resolvable:$true] %s61
      %67 = dma.hbm_to_vmem [thread:$0]  %s5, 1024, %s62, [#allocation9], 64, 64, 4
    $region25: #{tpu_custom_call.1} parent=1 // pred_fallthru
      _
    // Predicated region
    $region26: #{tpu_custom_call.1} parent=1 // pred_check
      _
    $region27: #{tpu_custom_call.1} parent=1 // pred_check_branch
      %69 = sbr.rel (0) target = $region29
    $region28: #{tpu_custom_call.1} parent=1 // pred_region
      _
    $region29: #{tpu_custom_call.1} parent=1 // pred_fallthru
      _
    // Predicated region
    $region30: #{tpu_custom_call.1} parent=1 // pred_check
      _
    $region31: #{tpu_custom_call.1} parent=1 // pred_check_branch
      %71 = sbr.rel (0) target = $region33
    $region32: #{tpu_custom_call.1} parent=1 // pred_region
      %72 = dma.done [#allocation3], 128
    $region33: #{tpu_custom_call.1} parent=1 // pred_fallthru
      _
    // Predicated region
    $region34: #{tpu_custom_call.1} parent=1 // pred_check
      _
    $region35: #{tpu_custom_call.1} parent=1 // pred_check_branch
      %74 = sbr.rel (0) target = $region37
    $region36: #{tpu_custom_call.1} parent=1 // pred_region
      %75 = dma.done [#allocation6], 512
    $region37: #{tpu_custom_call.1} parent=1 // pred_fallthru
      _
    // Predicated region
    $region38: #{tpu_custom_call.1} parent=1 // pred_check
      _
    $region39: #{tpu_custom_call.1} parent=1 // pred_check_branch
      %77 = sbr.rel (0) target = $region41
    $region40: #{tpu_custom_call.1} parent=1 // pred_region
      %78 = dma.done [#allocation6], 1024
    $region41: #{tpu_custom_call.1} parent=1 // pred_fallthru
      _
    // Predicated region
    $region42: #{tpu_custom_call.1} parent=1 // pred_check
      _
    $region43: #{tpu_custom_call.1} parent=1 // pred_check_branch
      %80 = sbr.rel (0) target = $region45
    $region44: #{tpu_custom_call.1} parent=1 // pred_region
      %81 = dma.done [#allocation9], 1024
    $region45: #{tpu_custom_call.1} parent=1 // pred_fallthru
      _
    %v83 = vld [vmem:[#allocation2] sm:$0xff]
    %v84 = vpack.c.bf16 %v83, %v83
    %v85 = vld [vmem:[#allocation5] sm:$0xf]
    %v86 = vld [vmem:[#allocation5 + $0x4] sm:$0xf]
    %v87 = vld [vmem:[#allocation5 + $0x8] sm:$0xf]
    %v88 = vld [vmem:[#allocation5 + $0xc] sm:$0xf]
    %v89 = vld [vmem:[#allocation5 + $0x10] sm:$0xf]
    %v90 = vld [vmem:[#allocation5 + $0x14] sm:$0xf]
    %v91 = vld [vmem:[#allocation5 + $0x18] sm:$0xf]
    %v92 = vld [vmem:[#allocation5 + $0x1c] sm:$0xf]
    %v93 = vld [vmem:[%s2] sm:$0x1]
    %v95 = vlaneseq
    %v96 = vshrl.u32 %v95, 7
    %v97 = vsub.s32 0, %v96
    %v98 = vrot.slane %v93, %v97
    %v108 = vunpack.c.l.b16 %v85
    %v109 = vunpack.c.l.b16 %v86
    %v110 = vunpack.c.l.b16 %v87
    %v111 = vunpack.c.l.b16 %v88
    %v112 = vunpack.c.l.b16 %v89
    %v113 = vunpack.c.l.b16 %v90
    %v114 = vunpack.c.l.b16 %v91
    %v115 = vunpack.c.l.b16 %v92
    %v116 = vpack.c.b16 %v109, %v108
    %v117 = vpack.c.b16 %v111, %v110
    %v118 = vpack.c.b16 %v113, %v112
    %v119 = vpack.c.b16 %v115, %v114
    %vm124 = vcmask 523264
    %v126 = vsel %vm124, %v84, 0
    %128 = vmatprep.subr.bf16.mxu0 0
    %129 = vmatpush1.bf16.msra.mxu0 %v116
    %130 = vmatprep.subr.bf16.mxu0 0
    %131 = vmatpush1.bf16.msra.mxu0 %v117
    %132 = vmatprep.subr.bf16.mxu0 0
    %133 = vmatpush1.bf16.msra.mxu0 %v118
    %134 = vmatprep.subr.bf16.mxu0 0
    %135 = vmatpush1.bf16.msra.mxu0 %v119
    %136 = vmatprep.subr.bf16.mxu0 0
    %137 = vmatpush1.bf16.msra.mxu0 0
    %138 = vmatprep.subr.bf16.mxu0 0
    %139 = vmatpush1.bf16.msra.mxu0 0
    %140 = vmatprep.subr.bf16.mxu0 0
    %141 = vmatpush1.bf16.msra.mxu0 0
    %142 = vmatprep.subr.bf16.mxu0 0
    %143 = vmatpush1.bf16.msra.mxu0 0
    %144 = vmatprep.subr.bf16.mxu0 0
    %145 = vmatpush1.bf16.msra.mxu0 0
    %146 = vmatprep.subr.bf16.mxu0 0
    %147 = vmatpush1.bf16.msra.mxu0 0
    %148 = vmatprep.subr.bf16.mxu0 0
    %149 = vmatpush1.bf16.msra.mxu0 0
    %150 = vmatprep.subr.bf16.mxu0 0
    %151 = vmatpush1.bf16.msra.mxu0 0
    %152 = vmatprep.subr.bf16.mxu0 0
    %153 = vmatpush1.bf16.msra.mxu0 0
    %154 = vmatprep.subr.bf16.mxu0 0
    %155 = vmatpush1.bf16.msra.mxu0 0
    %156 = vmatprep.subr.bf16.mxu0 0
    %157 = vmatpush1.bf16.msra.mxu0 0
    %158 = vmatprep.subr.bf16.mxu0 0
    %159 = vmatpush1.bf16.msra.mxu0 0
    %160 = vmatprep.mubr.bf16.mxu0 0
    %161 = vmatmul.mubr.bf16.gmra.mrb[0].mxu0 %v126
    %v162 = vpop.f32.mrb[0].mxu0
    %v163 = vadd.f32 %v98, %v162
    %v164 = vpop.f32.mrb[0].mxu0
    %v165 = vpop.f32.mrb[0].mxu0
    %v166 = vpop.f32.mrb[0].mxu0
    %167 = vdwg.mxu0
    %v168 = vmax.f32 %v163, 0.0
    %v169 = vpack.c.bf16 %v168, %v168
    %v170 = vld [vmem:[#allocation7] sm:$0xf]
    %v171 = vld [vmem:[#allocation7 + $0x4] sm:$0xf]
    %v172 = vld [vmem:[#allocation7 + $0x8] sm:$0xf]
    %v173 = vld [vmem:[#allocation7 + $0xc] sm:$0xf]
    %v174 = vld [vmem:[#allocation7 + $0x10] sm:$0xf]
    %v175 = vld [vmem:[#allocation7 + $0x14] sm:$0xf]
    %v176 = vld [vmem:[#allocation7 + $0x18] sm:$0xf]
    %v177 = vld [vmem:[#allocation7 + $0x1c] sm:$0xf]
    %v178 = vld [vmem:[#allocation7 + $0x20] sm:$0xf]
    %v179 = vld [vmem:[#allocation7 + $0x24] sm:$0xf]
    %v180 = vld [vmem:[#allocation7 + $0x28] sm:$0xf]
    %v181 = vld [vmem:[#allocation7 + $0x2c] sm:$0xf]
    %v182 = vld [vmem:[#allocation7 + $0x30] sm:$0xf]
    %v183 = vld [vmem:[#allocation7 + $0x34] sm:$0xf]
    %v184 = vld [vmem:[#allocation7 + $0x38] sm:$0xf]
    %v185 = vld [vmem:[#allocation7 + $0x3c] sm:$0xf]
    %v186 = vld [vmem:[%s4] sm:$0x1]
    %v188 = vlaneseq
    %v189 = vshrl.u32 %v188, 7
    %v190 = vsub.s32 0, %v189
    %v191 = vrot.slane %v186, %v190
    %v209 = vunpack.c.l.b16 %v170
    %v210 = vunpack.c.l.b16 %v171
    %v211 = vunpack.c.l.b16 %v172
    %v212 = vunpack.c.l.b16 %v173
    %v213 = vunpack.c.l.b16 %v174
    %v214 = vunpack.c.l.b16 %v175
    %v215 = vunpack.c.l.b16 %v176
    %v216 = vunpack.c.l.b16 %v177
    %v217 = vunpack.c.l.b16 %v178
    %v218 = vunpack.c.l.b16 %v179
    %v219 = vunpack.c.l.b16 %v180
    %v220 = vunpack.c.l.b16 %v181
    %v221 = vunpack.c.l.b16 %v182
    %v222 = vunpack.c.l.b16 %v183
    %v223 = vunpack.c.l.b16 %v184
    %v224 = vunpack.c.l.b16 %v185
    %v225 = vpack.c.b16 %v210, %v209
    %v226 = vpack.c.b16 %v212, %v211
    %v227 = vpack.c.b16 %v214, %v213
    %v228 = vpack.c.b16 %v216, %v215
    %v229 = vpack.c.b16 %v218, %v217
    %v230 = vpack.c.b16 %v220, %v219
    %v231 = vpack.c.b16 %v222, %v221
    %v232 = vpack.c.b16 %v224, %v223
    %241 = vmatprep.subr.bf16.mxu0 0
    %242 = vmatpush1.bf16.msra.mxu0 %v225
    %243 = vmatprep.subr.bf16.mxu0 0
    %244 = vmatpush1.bf16.msra.mxu0 %v226
    %245 = vmatprep.subr.bf16.mxu0 0
    %246 = vmatpush1.bf16.msra.mxu0 %v227
    %247 = vmatprep.subr.bf16.mxu0 0
    %248 = vmatpush1.bf16.msra.mxu0 %v228
    %249 = vmatprep.subr.bf16.mxu0 0
    %250 = vmatpush1.bf16.msra.mxu0 %v229
    %251 = vmatprep.subr.bf16.mxu0 0
    %252 = vmatpush1.bf16.msra.mxu0 %v230
    %253 = vmatprep.subr.bf16.mxu0 0
    %254 = vmatpush1.bf16.msra.mxu0 %v231
    %255 = vmatprep.subr.bf16.mxu0 0
    %256 = vmatpush1.bf16.msra.mxu0 %v232
    %257 = vmatprep.subr.bf16.mxu0 0
    %258 = vmatpush1.bf16.msra.mxu0 0
    %259 = vmatprep.subr.bf16.mxu0 0
    %260 = vmatpush1.bf16.msra.mxu0 0
    %261 = vmatprep.subr.bf16.mxu0 0
    %262 = vmatpush1.bf16.msra.mxu0 0
    %263 = vmatprep.subr.bf16.mxu0 0
    %264 = vmatpush1.bf16.msra.mxu0 0
    %265 = vmatprep.subr.bf16.mxu0 0
    %266 = vmatpush1.bf16.msra.mxu0 0
    %267 = vmatprep.subr.bf16.mxu0 0
    %268 = vmatpush1.bf16.msra.mxu0 0
    %269 = vmatprep.subr.bf16.mxu0 0
    %270 = vmatpush1.bf16.msra.mxu0 0
    %271 = vmatprep.subr.bf16.mxu0 0
    %272 = vmatpush1.bf16.msra.mxu0 0
    %273 = vmatprep.mubr.bf16.mxu0 0
    %274 = vmatmul.mubr.bf16.gmra.mrb[0].mxu0 %v169
    %v275 = vpop.f32.mrb[0].mxu0
    %v276 = vadd.f32 %v191, %v275
    %v277 = vpop.f32.mrb[0].mxu0
    %v278 = vpop.f32.mrb[0].mxu0
    %v279 = vpop.f32.mrb[0].mxu0
    %280 = vdwg.mxu0
    %v281 = vsub.f32 0.0, %v276
    %v282 = vmul.f32 %v281, 1.442695
    %v283 = vpow.pop %v282
    %v284 = vadd.f32 %v283, 1.0
    %v285 = vrcp.pop %v284
    %v286 = vpack.c.bf16 %v285, %v285
    %v287 = vld [vmem:[#allocation8] sm:$0xf]
    %v288 = vld [vmem:[#allocation8 + $0x4] sm:$0xf]
    %v289 = vld [vmem:[#allocation8 + $0x8] sm:$0xf]
    %v290 = vld [vmem:[#allocation8 + $0xc] sm:$0xf]
    %v291 = vld [vmem:[#allocation8 + $0x10] sm:$0xf]
    %v292 = vld [vmem:[#allocation8 + $0x14] sm:$0xf]
    %v293 = vld [vmem:[#allocation8 + $0x18] sm:$0xf]
    %v294 = vld [vmem:[#allocation8 + $0x1c] sm:$0xf]
    %v295 = vld [vmem:[#allocation8 + $0x20] sm:$0xf]
    %v296 = vld [vmem:[#allocation8 + $0x24] sm:$0xf]
    %v297 = vld [vmem:[#allocation8 + $0x28] sm:$0xf]
    %v298 = vld [vmem:[#allocation8 + $0x2c] sm:$0xf]
    %v299 = vld [vmem:[#allocation8 + $0x30] sm:$0xf]
    %v300 = vld [vmem:[#allocation8 + $0x34] sm:$0xf]
    %v301 = vld [vmem:[#allocation8 + $0x38] sm:$0xf]
    %v302 = vld [vmem:[#allocation8 + $0x3c] sm:$0xf]
    %v303 = vld [vmem:[%s6] sm:$0x1]
    %v305 = vlaneseq
    %v306 = vshrl.u32 %v305, 7
    %v307 = vsub.s32 0, %v306
    %v308 = vrot.slane %v303, %v307
    %v326 = vunpack.c.l.b16 %v287
    %v327 = vunpack.c.l.b16 %v288
    %v328 = vunpack.c.l.b16 %v289
    %v329 = vunpack.c.l.b16 %v290
    %v330 = vunpack.c.l.b16 %v291
    %v331 = vunpack.c.l.b16 %v292
    %v332 = vunpack.c.l.b16 %v293
    %v333 = vunpack.c.l.b16 %v294
    %v334 = vunpack.c.l.b16 %v295
    %v335 = vunpack.c.l.b16 %v296
    %v336 = vunpack.c.l.b16 %v297
    %v337 = vunpack.c.l.b16 %v298
    %v338 = vunpack.c.l.b16 %v299
    %v339 = vunpack.c.l.b16 %v300
    %v340 = vunpack.c.l.b16 %v301
    %v341 = vunpack.c.l.b16 %v302
    %v342 = vpack.c.b16 %v327, %v326
    %v343 = vpack.c.b16 %v329, %v328
    %v344 = vpack.c.b16 %v331, %v330
    %v345 = vpack.c.b16 %v333, %v332
    %v346 = vpack.c.b16 %v335, %v334
    %v347 = vpack.c.b16 %v337, %v336
    %v348 = vpack.c.b16 %v339, %v338
    %v349 = vpack.c.b16 %v341, %v340
    %358 = vmatprep.subr.bf16.mxu0 0
    %359 = vmatpush1.bf16.msra.mxu0 %v342
    %360 = vmatprep.subr.bf16.mxu0 0
    %361 = vmatpush1.bf16.msra.mxu0 %v343
    %362 = vmatprep.subr.bf16.mxu0 0
    %363 = vmatpush1.bf16.msra.mxu0 %v344
    %364 = vmatprep.subr.bf16.mxu0 0
    %365 = vmatpush1.bf16.msra.mxu0 %v345
    %366 = vmatprep.subr.bf16.mxu0 0
    %367 = vmatpush1.bf16.msra.mxu0 %v346
    %368 = vmatprep.subr.bf16.mxu0 0
    %369 = vmatpush1.bf16.msra.mxu0 %v347
    %370 = vmatprep.subr.bf16.mxu0 0
    %371 = vmatpush1.bf16.msra.mxu0 %v348
    %372 = vmatprep.subr.bf16.mxu0 0
    %373 = vmatpush1.bf16.msra.mxu0 %v349
    %374 = vmatprep.subr.bf16.mxu0 0
    %375 = vmatpush1.bf16.msra.mxu0 0
    %376 = vmatprep.subr.bf16.mxu0 0
    %377 = vmatpush1.bf16.msra.mxu0 0
    %378 = vmatprep.subr.bf16.mxu0 0
    %379 = vmatpush1.bf16.msra.mxu0 0
    %380 = vmatprep.subr.bf16.mxu0 0
    %381 = vmatpush1.bf16.msra.mxu0 0
    %382 = vmatprep.subr.bf16.mxu0 0
    %383 = vmatpush1.bf16.msra.mxu0 0
    %384 = vmatprep.subr.bf16.mxu0 0
    %385 = vmatpush1.bf16.msra.mxu0 0
    %386 = vmatprep.subr.bf16.mxu0 0
    %387 = vmatpush1.bf16.msra.mxu0 0
    %388 = vmatprep.subr.bf16.mxu0 0
    %389 = vmatpush1.bf16.msra.mxu0 0
    %390 = vmatprep.mubr.bf16.mxu0 0
    %391 = vmatmul.mubr.bf16.gmra.mrb[0].mxu0 %v286
    %v392 = vpop.f32.mrb[0].mxu0
    %v393 = vadd.f32 %v308, %v392
    %v394 = vpop.f32.mrb[0].mxu0
    %v395 = vpop.f32.mrb[0].mxu0
    %v396 = vpop.f32.mrb[0].mxu0
    %397 = vdwg.mxu0
    %398 = vmax.xlane.f32.xlu0 %v393
    %v399 = vpop.xlane.xlu0 %398
    %v400 = vsub.f32 %v393, %v399
    %v401 = vmul.f32 %v400, 1.442695
    %v402 = vpow.pop %v401
    %403 = vadd.xlane.f32.xlu0 %v402
    %v404 = vpop.xlane.xlu0 %403
    %v405 = vrcp.pop %v404
    %v406 = vmul.f32 %v402, %v405
    %v407 = vpack.c.bf16 %v406, %v406
    %v410 = vunpack.c.l.s4 1966171168
    %v411 = vunpack.c.0.s8 %v410
    %v412 = vlaneseq
    %v413 = vshrl.u32 %v412, 7
    %v414 = vsub.s32 %v411, %v413
    %v415 = vrot.slane %v407, %v414
    %v416 = vcombine.high %v415, %v415
    %v418 = vunpack.c.l.s4 1966171168
    %v419 = vunpack.c.0.s8 %v418
    %v420 = vlaneseq
    %v421 = vshrl.u32 %v420, 7
    %v422 = vsub.s32 %v419, %v421
    %v423 = vrot.slane %v415, %v422
    %v425 = vunpack.c.l.s4 1966171168
    %v426 = vunpack.c.0.s8 %v425
    %v427 = vlaneseq
    %v428 = vshrl.u32 %v427, 7
    %v429 = vsub.s32 %v426, %v428
    %v430 = vrot.slane %v416, %v429
    %v431 = vcombine.high %v423, %v423
    %v432 = vcombine.high %v430, %v430
    %437 = vst [vmem:[#allocation10] sm:$0x1] %v423
    %438 = vst [vmem:[#allocation10 + $0x1] sm:$0x1] %v430
    %439 = vst [vmem:[#allocation10 + $0x2] sm:$0x1] %v431
    %440 = vst [vmem:[#allocation10 + $0x3] sm:$0x1] %v432
    // Predicated region
    $region46: #{tpu_custom_call.1} parent=1 // pred_check
      _
    $region47: #{tpu_custom_call.1} parent=1 // pred_check_branch
      %442 = sbr.rel (0) target = $region49
    $region48: #{tpu_custom_call.1} parent=1 // pred_region
      %s444 = ssub.s32 64, 16
      %445 = vsyncadd [#allocation4], %s444
      %s446 = sshll.u32 [#allocation10], 4
      %s447 = int_to_ptr.vmem [resolvable:$true] %s446
      %452 = dma.vmem_to_hbm [thread:$0]  %s447, 16, %s7, [#allocation4], 16, 16, 1
    $region49: #{tpu_custom_call.1} parent=1 // pred_fallthru
      _
    // Predicated region
    $region50: #{tpu_custom_call.1} parent=1 // pred_check
      _
    $region51: #{tpu_custom_call.1} parent=1 // pred_check_branch
      %454 = sbr.rel (0) target = $region53
    $region52: #{tpu_custom_call.1} parent=1 // pred_region
      %455 = dma.done [#allocation4], 64
    $region53: #{tpu_custom_call.1} parent=1 // pred_fallthru
      _
    %456 = vsyncpa [#allocation3], 1
    %457 = vsyncpa [#allocation6], 1
    %458 = vsyncpa [#allocation9], 1
    %459 = vsyncpa [#allocation4], 1

</llo_original>
